<compile_context>
chip_gen: v7x
topology: tpu7x:2x2x1
jax: 0.10.0
libtpu: 0.0.40
codegen_flags: <defaults>
</compile_context>

<pallas_src>
import functools

import jax
import jax.numpy as jnp
from jax.experimental import pallas as pl
from jax.experimental.pallas import tpu as pltpu

F_IN = 5     # input features
H = 64       # hidden width
FP = 8       # padded x^T rows: 5 features + 1 ones-row + 2 zero rows
HA = 72      # augmented hidden: 64 + 1 ones-row, padded to a multiple of 8
ONES_X = F_IN   # row of x^T that holds ones (drives the layer-1 bias column)
ONES_H = H      # row of h that holds ones (drives the layer-2/3 bias columns)


def _round_up(x, m):
    return ((x + m - 1) // m) * m


def mlp_kernel(xt_ref, w1_ref, w2_ref, w3_ref, o_ref, *, dot_dtype):
    """Transposed 3-layer MLP: three MXU matmuls + two ReLUs, biases pre-folded."""
    xt = xt_ref[...]                                                   # (FP, bt)
    h1 = jnp.dot(w1_ref[...], xt, preferred_element_type=jnp.float32)  # (HA, bt)
    h1 = jnp.maximum(h1, 0.0).astype(dot_dtype)
    h2 = jnp.dot(w2_ref[...], h1, preferred_element_type=jnp.float32)  # (HA, bt)
    h2 = jnp.maximum(h2, 0.0).astype(dot_dtype)
    y = jnp.dot(w3_ref[...], h2, preferred_element_type=jnp.float32)   # (1, bt)
    o_ref[...] = y.astype(o_ref.dtype)


def build_augmented_weights(params, dtype=jnp.float32):
    """Fold biases into padded weight matrices (done once, outside the hot loop).

    Layout (PyTorch-native params: w (out, in), b (out,)):
      w1a (HA, FP): [:64,:5]=W1, [:64,5]=b1, [64,5]=1   -> h1a = relu(w1a @ x_aug)
      w2a (HA, HA): [:64,:64]=W2, [:64,64]=b2, [64,64]=1 -> h2a = relu(w2a @ h1a)
      w3a (1,  HA): [0,:64]=W3,  [0,64]=b3               -> y   = w3a @ h2a
    The ones-row (index 64) survives ReLU and propagates the bias column forward.
    """
    w1, b1 = params["w1"], params["b1"]
    w2, b2 = params["w2"], params["b2"]
    w3, b3 = params["w3"], params["b3"]

    w1a = jnp.zeros((HA, FP), jnp.float32)
    w1a = w1a.at[:H, :F_IN].set(w1)
    w1a = w1a.at[:H, ONES_X].set(b1)
    w1a = w1a.at[ONES_H, ONES_X].set(1.0)

    w2a = jnp.zeros((HA, HA), jnp.float32)
    w2a = w2a.at[:H, :H].set(w2)
    w2a = w2a.at[:H, ONES_H].set(b2)
    w2a = w2a.at[ONES_H, ONES_H].set(1.0)

    w3a = jnp.zeros((1, HA), jnp.float32)
    w3a = w3a.at[0, :H].set(w3[0])
    w3a = w3a.at[0, ONES_H].set(b3[0])

    return w1a.astype(dtype), w2a.astype(dtype), w3a.astype(dtype)


def fuel_prediction_forward(x, params, *, block_rows=8192, use_bf16_mxu=False):
    """x: (B, 5) float32. params: PyTorch-layout dict (w: (out,in), b: (out,))."""
    B, f = x.shape
    assert f == F_IN
    dot_dtype = jnp.bfloat16 if use_bf16_mxu else jnp.float32

    # Batch tile: lane-aligned (multiple of 128); capped so nb >= 2 when B > 128
    # (keeps both v7x TensorCores busy); large by default to amortize per-step cost.
    bt = max(128, min(_round_up(block_rows, 128),
                      _round_up(pl.cdiv(B, 2), 128)))
    b_pad = _round_up(B, bt)
    nb = b_pad // bt

    # One-shot layout transform: (B,5) -> (FP, b_pad) = [x^T ; ones ; zeros], padded
    # only on the ragged tail (no pad at all when B % bt == 0).
    xt = jnp.concatenate(
        [x.T.astype(dot_dtype),
         jnp.ones((1, B), dot_dtype),
         jnp.zeros((FP - F_IN - 1, B), dot_dtype)],
        axis=0)
    if b_pad != B:
        xt = jnp.pad(xt, ((0, 0), (0, b_pad - B)))

    w1a, w2a, w3a = build_augmented_weights(params, dot_dtype)

    resident = lambda shape: pl.BlockSpec(shape, lambda i: (0, 0))  # weights stay in VMEM

    flops = 2 * B * (F_IN * H + H * H + H)
    bytes_accessed = (x.size * x.dtype.itemsize + B * 4
                      + (w1a.size + w2a.size + w3a.size) * jnp.dtype(dot_dtype).itemsize)

    out = pl.pallas_call(
        functools.partial(mlp_kernel, dot_dtype=dot_dtype),
        out_shape=jax.ShapeDtypeStruct((1, b_pad), jnp.float32),
        grid=(nb,),
        in_specs=[
            pl.BlockSpec((FP, bt), lambda i: (0, i)),   # x^T: walked by the grid
            resident(w1a.shape),
            resident(w2a.shape),
            resident(w3a.shape),
        ],
        out_specs=pl.BlockSpec((1, bt), lambda i: (0, i)),  # lane-dense output block
        compiler_params=pltpu.CompilerParams(
            dimension_semantics=("parallel",),
        ),
        cost_estimate=pl.CostEstimate(
            flops=flops, transcendentals=0, bytes_accessed=bytes_accessed),
    )(xt, w1a, w2a, w3a)

    # (1, b_pad) -> (B, 1): slice off batch padding, trivial reshape.
    return out[0, :B].reshape(B, 1)


def init_params(key):
    """nn.Linear-style uniform(-1/sqrt(fan_in), 1/sqrt(fan_in)) init, PyTorch layout."""
    keys = jax.random.split(key, 6)

    def uniform(k, shape, fan_in):
        bound = 1.0 / jnp.sqrt(jnp.float32(fan_in))
        return jax.random.uniform(k, shape, jnp.float32, -bound, bound)

    return {
        "w1": uniform(keys[0], (H, F_IN), F_IN), "b1": uniform(keys[1], (H,), F_IN),
        "w2": uniform(keys[2], (H, H), H),       "b2": uniform(keys[3], (H,), H),
        "w3": uniform(keys[4], (1, H), H),       "b3": uniform(keys[5], (1,), H),
    }


def reference_forward(x, p):
    h = jnp.maximum(x @ p["w1"].T + p["b1"], 0.0)
    h = jnp.maximum(h @ p["w2"].T + p["b2"], 0.0)
    return h @ p["w3"].T + p["b3"]


if __name__ == "__main__":
    key = jax.random.PRNGKey(0)
    k_param, k_x1, k_x2 = jax.random.split(key, 3)
    params = init_params(k_param)

    # Small batch (single grid step).
    x1 = jax.random.normal(k_x1, (8, F_IN), jnp.float32)
    out1 = jax.block_until_ready(fuel_prediction_forward(x1, params))
    ref1 = reference_forward(x1, params)
    assert out1.shape == (8, 1)
    assert jnp.allclose(out1, ref1, atol=1e-4, rtol=1e-4), "mismatch vs JAX reference (B=8)"

    # Multi-block grid with a ragged tail (exercises grid walking + tail padding).
    x2 = jax.random.normal(k_x2, (300, F_IN), jnp.float32)
    out2 = jax.block_until_ready(fuel_prediction_forward(x2, params, block_rows=128))
    ref2 = reference_forward(x2, params)
    assert out2.shape == (300, 1)
    assert jnp.allclose(out2, ref2, atol=1e-4, rtol=1e-4), "mismatch vs JAX reference (B=300)"

    print("KERNEL_OK")
</pallas_src>

<mosaic_0001>
module attributes {stable_mosaic.version = 11 : i64} {
  func.func @mlp_kernel(%arg0: i32, %arg1: memref<8x128xf32, #tpu.memory_space<vmem>>, %arg2: memref<72x8xf32, #tpu.memory_space<vmem>>, %arg3: memref<72x72xf32, #tpu.memory_space<vmem>>, %arg4: memref<1x72xf32, #tpu.memory_space<vmem>>, %arg5: memref<1x128xf32, #tpu.memory_space<vmem>>) attributes {dimension_semantics = [#tpu.dimension_semantics<parallel>], iteration_bounds = array<i64: 1>, scalar_prefetch = 0 : i64, scratch_operands = 0 : i64, tpu.core_type = #tpu.core_type<tc>, window_params = [{transform_indices = @transform_0, window_bounds = array<i64: 8, 128>}, {pipeline_mode = #tpu.pipeline_mode<synchronous>, transform_indices = @transform_1, window_bounds = array<i64: 72, 8>}, {pipeline_mode = #tpu.pipeline_mode<synchronous>, transform_indices = @transform_2, window_bounds = array<i64: 72, 72>}, {pipeline_mode = #tpu.pipeline_mode<synchronous>, transform_indices = @transform_3, window_bounds = array<i64: 1, 72>}, {transform_indices = @transform_4, window_bounds = array<i64: 1, 128>}]} {
    %c0 = arith.constant 0 : index
    %c0_0 = arith.constant 0 : index
    %0 = vector.load %arg1[%c0, %c0_0] : memref<8x128xf32, #tpu.memory_space<vmem>>, vector<8x128xf32>
    %c0_1 = arith.constant 0 : index
    %c0_2 = arith.constant 0 : index
    %1 = vector.load %arg2[%c0_1, %c0_2] : memref<72x8xf32, #tpu.memory_space<vmem>>, vector<72x8xf32>
    %cst = arith.constant dense<0.000000e+00> : vector<72x128xf32>
    %2 = tpu.matmul %1, %0, %cst {dimension_numbers = #tpu.dot_dimension_numbers<[1], [0], [0], [1], [0, 0, 1, 1], [], []>} : vector<72x8xf32>, vector<8x128xf32>, vector<72x128xf32> -> vector<72x128xf32>
    %cst_3 = arith.constant 0.000000e+00 : f32
    %3 = vector.broadcast %cst_3 : f32 to vector<72x128xf32>
    %4 = arith.maximumf %2, %3 : vector<72x128xf32>
    %c0_4 = arith.constant 0 : index
    %c0_5 = arith.constant 0 : index
    %5 = vector.load %arg3[%c0_4, %c0_5] : memref<72x72xf32, #tpu.memory_space<vmem>>, vector<72x72xf32>
    %cst_6 = arith.constant dense<0.000000e+00> : vector<72x128xf32>
    %6 = tpu.matmul %5, %4, %cst_6 {dimension_numbers = #tpu.dot_dimension_numbers<[1], [0], [0], [1], [0, 0, 1, 1], [], []>} : vector<72x72xf32>, vector<72x128xf32>, vector<72x128xf32> -> vector<72x128xf32>
    %cst_7 = arith.constant 0.000000e+00 : f32
    %7 = vector.broadcast %cst_7 : f32 to vector<72x128xf32>
    %8 = arith.maximumf %6, %7 : vector<72x128xf32>
    %c0_8 = arith.constant 0 : index
    %c0_9 = arith.constant 0 : index
    %9 = vector.load %arg4[%c0_8, %c0_9] : memref<1x72xf32, #tpu.memory_space<vmem>>, vector<1x72xf32>
    %cst_10 = arith.constant dense<0.000000e+00> : vector<1x128xf32>
    %10 = tpu.matmul %9, %8, %cst_10 {dimension_numbers = #tpu.dot_dimension_numbers<[1], [0], [0], [1], [0, 0, 1, 1], [], []>} : vector<1x72xf32>, vector<72x128xf32>, vector<1x128xf32> -> vector<1x128xf32>
    %c0_11 = arith.constant 0 : index
    %c0_12 = arith.constant 0 : index
    %11 = vector.load %arg5[%c0_11, %c0_12] : memref<1x128xf32, #tpu.memory_space<vmem>>, vector<1x128xf32>
    tpu.vector_store %arg5[%c0_11, %c0_12], %10 {strides = array<i32>} : memref<1x128xf32, #tpu.memory_space<vmem>>, vector<1x128xf32>,
    return
  }
  func.func @transform_0(%arg0: i32) -> (i32, i32) {
    %c0_i32 = arith.constant 0 : i32
    %c0_i32_0 = arith.constant 0 : i32
    return %c0_i32, %arg0 : i32, i32
  }
  func.func @transform_1(%arg0: i32) -> (i32, i32) {
    %c0_i32 = arith.constant 0 : i32
    %c0_i32_0 = arith.constant 0 : i32
    %c0_i32_1 = arith.constant 0 : i32
    return %c0_i32, %c0_i32_0 : i32, i32
  }
  func.func @transform_2(%arg0: i32) -> (i32, i32) {
    %c0_i32 = arith.constant 0 : i32
    %c0_i32_0 = arith.constant 0 : i32
    %c0_i32_1 = arith.constant 0 : i32
    return %c0_i32, %c0_i32_0 : i32, i32
  }
  func.func @transform_3(%arg0: i32) -> (i32, i32) {
    %c0_i32 = arith.constant 0 : i32
    %c0_i32_0 = arith.constant 0 : i32
    %c0_i32_1 = arith.constant 0 : i32
    return %c0_i32, %c0_i32_0 : i32, i32
  }
  func.func @transform_4(%arg0: i32) -> (i32, i32) {
    %c0_i32 = arith.constant 0 : i32
    %c0_i32_0 = arith.constant 0 : i32
    return %c0_i32, %arg0 : i32, i32
  }
}

</mosaic_0001>

<llo_original>
// kernel: tpu_custom_call.1
$region0: #{tpu_custom_call.1}
  #allocation0 [shape = 'u32[]', space=smem, size = 0x4, offset = 0x4, fixed_abs, tag = 'smem constant byte address 0x4 - core index']
  #allocation1 [shape = 'u32[144,128]{1,0:T(1,128)}', space=vmem, size = 0x12000, scoped, tag = 'internal scratch']
  %s0 = inlined_call_operand.vmem [shape: f32[8,128], index: 0, kind: input, shape index: {}]
  %s1 = inlined_call_operand.vmem [shape: f32[72,8], index: 1, kind: input, shape index: {}]
  %s2 = inlined_call_operand.vmem [shape: f32[72,72], index: 2, kind: input, shape index: {}]
  %s3 = inlined_call_operand.vmem [shape: f32[1,72], index: 3, kind: input, shape index: {}]
  %s4 = inlined_call_operand.hbm [shape: f32[1,128], index: 4, kind: output, shape index: {}]
  %s5 = sld [smem:[#allocation0]]
  $region26: #{tpu_custom_call.1} parent=0
    _
  %s7 = ssub.s32 1, %s5
  %s8 = scalar_select 0, %s7, %s5
  $region1: #{tpu_custom_call.1} parent=0
    #allocation2 [shape = 'u8[512]{0}', space=vmem, size = 0x400, scoped, tag = 'output window, operand 0, single buffered']
    #allocation3 [shape = 's32[1]{0}', space=sflag, size = 0x4, scoped, tag = 'scoped memory for tpu_custom_call.1']
    %9 = vsyncpa [#allocation3], 0
    // Predicated region
    $region2: #{tpu_custom_call.1} parent=1 // pred_check
      _
    $region3: #{tpu_custom_call.1} parent=1 // pred_check_branch
      %11 = sbr.rel (0) target = $region5
    $region4: #{tpu_custom_call.1} parent=1 // pred_region
      _
    $region5: #{tpu_custom_call.1} parent=1 // pred_fallthru
      _
    // Predicated region
    $region6: #{tpu_custom_call.1} parent=1 // pred_check
      _
    $region7: #{tpu_custom_call.1} parent=1 // pred_check_branch
      %13 = sbr.rel (0) target = $region9
    $region8: #{tpu_custom_call.1} parent=1 // pred_region
      _
    $region9: #{tpu_custom_call.1} parent=1 // pred_fallthru
      _
    // Predicated region
    $region10: #{tpu_custom_call.1} parent=1 // pred_check
      _
    $region11: #{tpu_custom_call.1} parent=1 // pred_check_branch
      %15 = sbr.rel (0) target = $region13
    $region12: #{tpu_custom_call.1} parent=1 // pred_region
      _
    $region13: #{tpu_custom_call.1} parent=1 // pred_fallthru
      _
    // Predicated region
    $region14: #{tpu_custom_call.1} parent=1 // pred_check
      _
    $region15: #{tpu_custom_call.1} parent=1 // pred_check_branch
      %17 = sbr.rel (0) target = $region17
    $region16: #{tpu_custom_call.1} parent=1 // pred_region
      _
    $region17: #{tpu_custom_call.1} parent=1 // pred_fallthru
      _
    %v18 = vld [vmem:[%s0] sm:$0xff]
    %v19 = vld [vmem:[%s1] sm:$0xff]
    %v20 = vld [vmem:[%s1 + $0x8] sm:$0xff]
    %v21 = vld [vmem:[%s1 + $0x10] sm:$0xff]
    %v22 = vld [vmem:[%s1 + $0x18] sm:$0xff]
    %v23 = vld [vmem:[%s1 + $0x20] sm:$0xff]
    %v24 = vld [vmem:[%s1 + $0x28] sm:$0xff]
    %v25 = vld [vmem:[%s1 + $0x30] sm:$0xff]
    %v26 = vld [vmem:[%s1 + $0x38] sm:$0xff]
    %v27 = vld [vmem:[%s1 + $0x40] sm:$0xff]
    %vm28 = vcmask 64512
    %v30 = vsel %vm28, %v19, 0
    %v33 = vsel %vm28, %v20, 0
    %v36 = vsel %vm28, %v21, 0
    %v39 = vsel %vm28, %v22, 0
    %v42 = vsel %vm28, %v23, 0
    %v45 = vsel %vm28, %v24, 0
    %v48 = vsel %vm28, %v25, 0
    %v51 = vsel %vm28, %v26, 0
    %v54 = vsel %vm28, %v27, 0
    %56 = vmatprep.subr.mxu0 0.0
    %57 = vmatpush1.msra.mxu0 %v18
    %58 = vmatprep.subr.mxu0 0.0
    %59 = vmatpush1.msra.mxu0 0.0
    %60 = vmatprep.subr.mxu0 0.0
    %61 = vmatpush1.msra.mxu0 0.0
    %62 = vmatprep.subr.mxu0 0.0
    %63 = vmatpush1.msra.mxu0 0.0
    %64 = vmatprep.subr.mxu0 0.0
    %65 = vmatpush1.msra.mxu0 0.0
    %66 = vmatprep.subr.mxu0 0.0
    %67 = vmatpush1.msra.mxu0 0.0
    %68 = vmatprep.subr.mxu0 0.0
    %69 = vmatpush1.msra.mxu0 0.0
    %70 = vmatprep.subr.mxu0 0.0
    %71 = vmatpush1.msra.mxu0 0.0
    %72 = vmatprep.subr.mxu0 0.0
    %73 = vmatpush1.msra.mxu0 0.0
    %74 = vmatprep.subr.mxu0 0.0
    %75 = vmatpush1.msra.mxu0 0.0
    %76 = vmatprep.subr.mxu0 0.0
    %77 = vmatpush1.msra.mxu0 0.0
    %78 = vmatprep.subr.mxu0 0.0
    %79 = vmatpush1.msra.mxu0 0.0
    %80 = vmatprep.subr.mxu0 0.0
    %81 = vmatpush1.msra.mxu0 0.0
    %82 = vmatprep.subr.mxu0 0.0
    %83 = vmatpush1.msra.mxu0 0.0
    %84 = vmatprep.subr.mxu0 0.0
    %85 = vmatpush1.msra.mxu0 0.0
    %86 = vmatprep.subr.mxu0 0.0
    %87 = vmatpush1.msra.mxu0 0.0
    %88 = vmatprep.subr.mxu0 0.0
    %89 = vmatpush1.msra.mxu0 0.0
    %90 = vmatprep.subr.mxu0 0.0
    %91 = vmatpush1.msra.mxu0 0.0
    %92 = vmatprep.subr.mxu0 0.0
    %93 = vmatpush1.msra.mxu0 0.0
    %94 = vmatprep.subr.mxu0 0.0
    %95 = vmatpush1.msra.mxu0 0.0
    %96 = vmatprep.subr.mxu0 0.0
    %97 = vmatpush1.msra.mxu0 0.0
    %98 = vmatprep.subr.mxu0 0.0
    %99 = vmatpush1.msra.mxu0 0.0
    %100 = vmatprep.subr.mxu0 0.0
    %101 = vmatpush1.msra.mxu0 0.0
    %102 = vmatprep.subr.mxu0 0.0
    %103 = vmatpush1.msra.mxu0 0.0
    %104 = vmatprep.subr.mxu0 0.0
    %105 = vmatpush1.msra.mxu0 0.0
    %106 = vmatprep.subr.mxu0 0.0
    %107 = vmatpush1.msra.mxu0 0.0
    %108 = vmatprep.subr.mxu0 0.0
    %109 = vmatpush1.msra.mxu0 0.0
    %110 = vmatprep.subr.mxu0 0.0
    %111 = vmatpush1.msra.mxu0 0.0
    %112 = vmatprep.subr.mxu0 0.0
    %113 = vmatpush1.msra.mxu0 0.0
    %114 = vmatprep.subr.mxu0 0.0
    %115 = vmatpush1.msra.mxu0 0.0
    %116 = vmatprep.subr.mxu0 0.0
    %117 = vmatpush1.msra.mxu0 0.0
    %118 = vmatprep.subr.mxu0 0.0
    %119 = vmatpush1.msra.mxu0 0.0
    %120 = vmatprep.mubr.f32.mxu0 0.0
    %121 = vmatmul.mubr.f32.gmra.mrb[0].mxu0 %v30
    %v122 = vpop.f32.mrb[0].mxu0
    %v123 = vadd.f32 0.0, %v122
    %v124 = vpop.f32.mrb[0].mxu0
    %125 = vmatprep.mubr.f32.mxu0 0.0
    %126 = vmatmul.mubr.f32.gmra.mrb[0].mxu0 %v33
    %v127 = vpop.f32.mrb[0].mxu0
    %v128 = vadd.f32 0.0, %v127
    %v129 = vpop.f32.mrb[0].mxu0
    %130 = vmatprep.mubr.f32.mxu0 0.0
    %131 = vmatmul.mubr.f32.gmra.mrb[0].mxu0 %v36
    %v132 = vpop.f32.mrb[0].mxu0
    %v133 = vadd.f32 0.0, %v132
    %v134 = vpop.f32.mrb[0].mxu0
    %135 = vmatprep.mubr.f32.mxu0 0.0
    %136 = vmatmul.mubr.f32.gmra.mrb[0].mxu0 %v39
    %v137 = vpop.f32.mrb[0].mxu0
    %v138 = vadd.f32 0.0, %v137
    %v139 = vpop.f32.mrb[0].mxu0
    %140 = vmatprep.mubr.f32.mxu0 0.0
    %141 = vmatmul.mubr.f32.gmra.mrb[0].mxu0 %v42
    %v142 = vpop.f32.mrb[0].mxu0
    %v143 = vadd.f32 0.0, %v142
    %v144 = vpop.f32.mrb[0].mxu0
    %145 = vmatprep.mubr.f32.mxu0 0.0
    %146 = vmatmul.mubr.f32.gmra.mrb[0].mxu0 %v45
    %v147 = vpop.f32.mrb[0].mxu0
    %v148 = vadd.f32 0.0, %v147
    %v149 = vpop.f32.mrb[0].mxu0
    %150 = vmatprep.mubr.f32.mxu0 0.0
    %151 = vmatmul.mubr.f32.gmra.mrb[0].mxu0 %v48
    %v152 = vpop.f32.mrb[0].mxu0
    %v153 = vadd.f32 0.0, %v152
    %v154 = vpop.f32.mrb[0].mxu0
    %155 = vmatprep.mubr.f32.mxu0 0.0
    %156 = vmatmul.mubr.f32.gmra.mrb[0].mxu0 %v51
    %v157 = vpop.f32.mrb[0].mxu0
    %v158 = vadd.f32 0.0, %v157
    %v159 = vpop.f32.mrb[0].mxu0
    %160 = vmatprep.mubr.f32.mxu0 0.0
    %161 = vmatmul.mubr.f32.gmra.mrb[0].mxu0 %v54
    %v162 = vpop.f32.mrb[0].mxu0
    %v163 = vadd.f32 0.0, %v162
    %v164 = vpop.f32.mrb[0].mxu0
    %165 = vdwg.mxu0
    %v166 = vmax.f32 %v123, 0.0
    %v167 = vmax.f32 %v128, 0.0
    %v168 = vmax.f32 %v133, 0.0
    %v169 = vmax.f32 %v138, 0.0
    %v170 = vmax.f32 %v143, 0.0
    %v171 = vmax.f32 %v148, 0.0
    %v172 = vmax.f32 %v153, 0.0
    %v173 = vmax.f32 %v158, 0.0
    %v174 = vmax.f32 %v163, 0.0
    %v175 = vld [vmem:[%s2] sm:$0xff]
    %v176 = vld [vmem:[%s2 + $0x8] sm:$0xff]
    %v177 = vld [vmem:[%s2 + $0x10] sm:$0xff]
    %v178 = vld [vmem:[%s2 + $0x18] sm:$0xff]
    %v179 = vld [vmem:[%s2 + $0x20] sm:$0xff]
    %v180 = vld [vmem:[%s2 + $0x28] sm:$0xff]
    %v181 = vld [vmem:[%s2 + $0x30] sm:$0xff]
    %v182 = vld [vmem:[%s2 + $0x38] sm:$0xff]
    %v183 = vld [vmem:[%s2 + $0x40] sm:$0xff]
    %vm184 = vcmask 588800
    %v186 = vsel %vm184, %v175, 0
    %v189 = vsel %vm184, %v176, 0
    %v192 = vsel %vm184, %v177, 0
    %v195 = vsel %vm184, %v178, 0
    %v198 = vsel %vm184, %v179, 0
    %v201 = vsel %vm184, %v180, 0
    %v204 = vsel %vm184, %v181, 0
    %v207 = vsel %vm184, %v182, 0
    %v210 = vsel %vm184, %v183, 0
    %212 = vmatprep.subr.mxu0 0.0
    %213 = vmatpush1.msra.mxu0 %v166
    %214 = vmatprep.subr.mxu0 0.0
    %215 = vmatpush1.msra.mxu0 %v167
    %216 = vmatprep.subr.mxu0 0.0
    %217 = vmatpush1.msra.mxu0 %v168
    %218 = vmatprep.subr.mxu0 0.0
    %219 = vmatpush1.msra.mxu0 %v169
    %220 = vmatprep.subr.mxu0 0.0
    %221 = vmatpush1.msra.mxu0 %v170
    %222 = vmatprep.subr.mxu0 0.0
    %223 = vmatpush1.msra.mxu0 %v171
    %224 = vmatprep.subr.mxu0 0.0
    %225 = vmatpush1.msra.mxu0 %v172
    %226 = vmatprep.subr.mxu0 0.0
    %227 = vmatpush1.msra.mxu0 %v173
    %228 = vmatprep.subr.mxu0 0.0
    %229 = vmatpush1.msra.mxu0 %v174
    %230 = vmatprep.subr.mxu0 0.0
    %231 = vmatpush1.msra.mxu0 0.0
    %232 = vmatprep.subr.mxu0 0.0
    %233 = vmatpush1.msra.mxu0 0.0
    %234 = vmatprep.subr.mxu0 0.0
    %235 = vmatpush1.msra.mxu0 0.0
    %236 = vmatprep.subr.mxu0 0.0
    %237 = vmatpush1.msra.mxu0 0.0
    %238 = vmatprep.subr.mxu0 0.0
    %239 = vmatpush1.msra.mxu0 0.0
    %240 = vmatprep.subr.mxu0 0.0
    %241 = vmatpush1.msra.mxu0 0.0
    %242 = vmatprep.subr.mxu0 0.0
    %243 = vmatpush1.msra.mxu0 0.0
    %244 = vmatprep.subr.mxu0 0.0
    %245 = vmatpush1.msra.mxu0 0.0
    %246 = vmatprep.subr.mxu0 0.0
    %247 = vmatpush1.msra.mxu0 0.0
    %248 = vmatprep.subr.mxu0 0.0
    %249 = vmatpush1.msra.mxu0 0.0
    %250 = vmatprep.subr.mxu0 0.0
    %251 = vmatpush1.msra.mxu0 0.0
    %252 = vmatprep.subr.mxu0 0.0
    %253 = vmatpush1.msra.mxu0 0.0
    %254 = vmatprep.subr.mxu0 0.0
    %255 = vmatpush1.msra.mxu0 0.0
    %256 = vmatprep.subr.mxu0 0.0
    %257 = vmatpush1.msra.mxu0 0.0
    %258 = vmatprep.subr.mxu0 0.0
    %259 = vmatpush1.msra.mxu0 0.0
    %260 = vmatprep.subr.mxu0 0.0
    %261 = vmatpush1.msra.mxu0 0.0
    %262 = vmatprep.subr.mxu0 0.0
    %263 = vmatpush1.msra.mxu0 0.0
    %264 = vmatprep.subr.mxu0 0.0
    %265 = vmatpush1.msra.mxu0 0.0
    %266 = vmatprep.subr.mxu0 0.0
    %267 = vmatpush1.msra.mxu0 0.0
    %268 = vmatprep.subr.mxu0 0.0
    %269 = vmatpush1.msra.mxu0 0.0
    %270 = vmatprep.subr.mxu0 0.0
    %271 = vmatpush1.msra.mxu0 0.0
    %272 = vmatprep.subr.mxu0 0.0
    %273 = vmatpush1.msra.mxu0 0.0
    %274 = vmatprep.subr.mxu0 0.0
    %275 = vmatpush1.msra.mxu0 0.0
    %276 = vmatprep.mubr.f32.mxu0 0.0
    %277 = vmatmul.mubr.f32.gmra.mrb[0].mxu0 %v186
    %v278 = vpop.f32.mrb[0].mxu0
    %v279 = vadd.f32 0.0, %v278
    %v280 = vpop.f32.mrb[0].mxu0
    %281 = vmatprep.mubr.f32.mxu0 0.0
    %282 = vmatmul.mubr.f32.gmra.mrb[0].mxu0 %v189
    %v283 = vpop.f32.mrb[0].mxu0
    %v284 = vadd.f32 0.0, %v283
    %v285 = vpop.f32.mrb[0].mxu0
    %286 = vmatprep.mubr.f32.mxu0 0.0
    %287 = vmatmul.mubr.f32.gmra.mrb[0].mxu0 %v192
    %v288 = vpop.f32.mrb[0].mxu0
    %v289 = vadd.f32 0.0, %v288
    %v290 = vpop.f32.mrb[0].mxu0
    %291 = vmatprep.mubr.f32.mxu0 0.0
    %292 = vmatmul.mubr.f32.gmra.mrb[0].mxu0 %v195
    %v293 = vpop.f32.mrb[0].mxu0
    %v294 = vadd.f32 0.0, %v293
    %v295 = vpop.f32.mrb[0].mxu0
    %296 = vmatprep.mubr.f32.mxu0 0.0
    %297 = vmatmul.mubr.f32.gmra.mrb[0].mxu0 %v198
    %v298 = vpop.f32.mrb[0].mxu0
    %v299 = vadd.f32 0.0, %v298
    %v300 = vpop.f32.mrb[0].mxu0
    %301 = vmatprep.mubr.f32.mxu0 0.0
    %302 = vmatmul.mubr.f32.gmra.mrb[0].mxu0 %v201
    %v303 = vpop.f32.mrb[0].mxu0
    %v304 = vadd.f32 0.0, %v303
    %v305 = vpop.f32.mrb[0].mxu0
    %306 = vmatprep.mubr.f32.mxu0 0.0
    %307 = vmatmul.mubr.f32.gmra.mrb[0].mxu0 %v204
    %v308 = vpop.f32.mrb[0].mxu0
    %v309 = vadd.f32 0.0, %v308
    %v310 = vpop.f32.mrb[0].mxu0
    %311 = vmatprep.mubr.f32.mxu0 0.0
    %312 = vmatmul.mubr.f32.gmra.mrb[0].mxu0 %v207
    %v313 = vpop.f32.mrb[0].mxu0
    %v314 = vadd.f32 0.0, %v313
    %v315 = vpop.f32.mrb[0].mxu0
    %316 = vmatprep.mubr.f32.mxu0 0.0
    %317 = vmatmul.mubr.f32.gmra.mrb[0].mxu0 %v210
    %v318 = vpop.f32.mrb[0].mxu0
    %v319 = vadd.f32 0.0, %v318
    %v320 = vpop.f32.mrb[0].mxu0
    %321 = vdwg.mxu0
    %v322 = vmax.f32 %v279, 0.0
    %v323 = vmax.f32 %v284, 0.0
    %v324 = vmax.f32 %v289, 0.0
    %v325 = vmax.f32 %v294, 0.0
    %v326 = vmax.f32 %v299, 0.0
    %v327 = vmax.f32 %v304, 0.0
    %v328 = vmax.f32 %v309, 0.0
    %v329 = vmax.f32 %v314, 0.0
    %v330 = vmax.f32 %v319, 0.0
    %v331 = vld [vmem:[%s3] sm:$0x1]
    %v333 = vsel %vm184, %v331, 0
    %335 = vmatprep.subr.mxu0 0.0
    %336 = vmatpush1.msra.mxu0 %v322
    %337 = vmatprep.subr.mxu0 0.0
    %338 = vmatpush1.msra.mxu0 %v323
    %339 = vmatprep.subr.mxu0 0.0
    %340 = vmatpush1.msra.mxu0 %v324
    %341 = vmatprep.subr.mxu0 0.0
    %342 = vmatpush1.msra.mxu0 %v325
    %343 = vmatprep.subr.mxu0 0.0
    %344 = vmatpush1.msra.mxu0 %v326
    %345 = vmatprep.subr.mxu0 0.0
    %346 = vmatpush1.msra.mxu0 %v327
    %347 = vmatprep.subr.mxu0 0.0
    %348 = vmatpush1.msra.mxu0 %v328
    %349 = vmatprep.subr.mxu0 0.0
    %350 = vmatpush1.msra.mxu0 %v329
    %351 = vmatprep.subr.mxu0 0.0
    %352 = vmatpush1.msra.mxu0 %v330
    %353 = vmatprep.subr.mxu0 0.0
    %354 = vmatpush1.msra.mxu0 0.0
    %355 = vmatprep.subr.mxu0 0.0
    %356 = vmatpush1.msra.mxu0 0.0
    %357 = vmatprep.subr.mxu0 0.0
    %358 = vmatpush1.msra.mxu0 0.0
    %359 = vmatprep.subr.mxu0 0.0
    %360 = vmatpush1.msra.mxu0 0.0
    %361 = vmatprep.subr.mxu0 0.0
    %362 = vmatpush1.msra.mxu0 0.0
    %363 = vmatprep.subr.mxu0 0.0
    %364 = vmatpush1.msra.mxu0 0.0
    %365 = vmatprep.subr.mxu0 0.0
    %366 = vmatpush1.msra.mxu0 0.0
    %367 = vmatprep.subr.mxu0 0.0
    %368 = vmatpush1.msra.mxu0 0.0
    %369 = vmatprep.subr.mxu0 0.0
    %370 = vmatpush1.msra.mxu0 0.0
    %371 = vmatprep.subr.mxu0 0.0
    %372 = vmatpush1.msra.mxu0 0.0
    %373 = vmatprep.subr.mxu0 0.0
    %374 = vmatpush1.msra.mxu0 0.0
    %375 = vmatprep.subr.mxu0 0.0
    %376 = vmatpush1.msra.mxu0 0.0
    %377 = vmatprep.subr.mxu0 0.0
    %378 = vmatpush1.msra.mxu0 0.0
    %379 = vmatprep.subr.mxu0 0.0
    %380 = vmatpush1.msra.mxu0 0.0
    %381 = vmatprep.subr.mxu0 0.0
    %382 = vmatpush1.msra.mxu0 0.0
    %383 = vmatprep.subr.mxu0 0.0
    %384 = vmatpush1.msra.mxu0 0.0
    %385 = vmatprep.subr.mxu0 0.0
    %386 = vmatpush1.msra.mxu0 0.0
    %387 = vmatprep.subr.mxu0 0.0
    %388 = vmatpush1.msra.mxu0 0.0
    %389 = vmatprep.subr.mxu0 0.0
    %390 = vmatpush1.msra.mxu0 0.0
    %391 = vmatprep.subr.mxu0 0.0
    %392 = vmatpush1.msra.mxu0 0.0
    %393 = vmatprep.subr.mxu0 0.0
    %394 = vmatpush1.msra.mxu0 0.0
    %395 = vmatprep.subr.mxu0 0.0
    %396 = vmatpush1.msra.mxu0 0.0
    %397 = vmatprep.subr.mxu0 0.0
    %398 = vmatpush1.msra.mxu0 0.0
    %399 = vmatprep.mubr.f32.mxu0 0.0
    %400 = vmatmul.mubr.f32.gmra.mrb[0].mxu0 %v333
    %v401 = vpop.f32.mrb[0].mxu0
    %v402 = vadd.f32 0.0, %v401
    %v403 = vpop.f32.mrb[0].mxu0
    %404 = vdwg.mxu0
    %405 = vst [vmem:[#allocation2] sm:$0x1] %v402
    // Predicated region
    $region18: #{tpu_custom_call.1} parent=1 // pred_check
      _
    $region19: #{tpu_custom_call.1} parent=1 // pred_check_branch
      %407 = sbr.rel (0) target = $region21
    $region20: #{tpu_custom_call.1} parent=1 // pred_region
      %s409 = ssub.s32 16, 16
      %410 = vsyncadd [#allocation3], %s409
      %s412 = sshll.u32 [#allocation2], 4
      %s413 = int_to_ptr.vmem [resolvable:$true] %s412
      %415 = dma.vmem_to_hbm [thread:$0]  %s413, 16, %s4, [#allocation3]
    $region21: #{tpu_custom_call.1} parent=1 // pred_fallthru
      _
    // Predicated region
    $region22: #{tpu_custom_call.1} parent=1 // pred_check
      _
    $region23: #{tpu_custom_call.1} parent=1 // pred_check_branch
      %417 = sbr.rel (0) target = $region25
    $region24: #{tpu_custom_call.1} parent=1 // pred_region
      %418 = dma.done [#allocation3], 16
    $region25: #{tpu_custom_call.1} parent=1 // pred_fallthru
      _
    %419 = vsyncpa [#allocation3], 1

</llo_original>
